<compile_context>
chip_gen: v5e
topology: v5e:2x2
jax: 0.10.0
libtpu: 0.0.40
codegen_flags: <defaults>
</compile_context>

<pallas_src>
import functools
import math

import jax
import jax.numpy as jnp
from jax.experimental import pallas as pl
from jax.experimental.pallas import tpu as pltpu


def _round_up(x, m):
    return ((x + m - 1) // m) * m


def _ln_proj_kernel(x_ref, g_ref, b_ref, w_ref, bias_ref, o_ref, y_ref):
    """Fused LayerNorm + Linear tile kernel.

    Grid = (M/tm, V/tn) with the vocab axis innermost ("arbitrary").  The
    LayerNorm result for the current row tile is computed once (j == 0) into
    the VMEM scratch y_ref and reused for every vocab tile.

    x_ref:    (tm, D)   f32  token embeddings (row tile, resident across j)
    g_ref:    (1, D)    f32  LayerNorm weight (gamma)
    b_ref:    (1, D)    f32  LayerNorm bias   (beta)
    w_ref:    (D, tn)   bf16 fc_out weight (transposed), streamed over j
    bias_ref: (1, tn)   f32  fc_out bias tile
    o_ref:    (tm, tn)  f32  logits tile
    y_ref:    (tm, D)   bf16 scratch: normalized+scaled activations
    """
    @pl.when(pl.program_id(1) == 0)
    def _():
        x = x_ref[...].astype(jnp.float32)
        # nn.LayerNorm semantics: biased variance, eps=1e-5, f32 math.
        mean = jnp.mean(x, axis=-1, keepdims=True)
        centered = x - mean
        var = jnp.mean(centered * centered, axis=-1, keepdims=True)
        xn = centered * jax.lax.rsqrt(var + 1e-5)
        y_ref[...] = (xn * g_ref[...] + b_ref[...]).astype(y_ref.dtype)

    # bf16 x bf16 MXU matmul with f32 accumulation, + bias.
    o_ref[...] = (
        jnp.dot(y_ref[...], w_ref[...], preferred_element_type=jnp.float32)
        + bias_ref[...]
    )


@functools.partial(jax.jit, static_argnames=("tm", "tn"))
def ln_proj(x, gamma, beta, w_t_bf16, bias, *, tm=256, tn=512):
    """x: (M, D) f32, gamma/beta: (D,), w_t_bf16: (D, V) bf16, bias: (V,) -> (M, V) f32."""
    M, D = x.shape
    V = w_t_bf16.shape[1]

    # Effective tiles: large by default, capped (not forced) for tiny inputs.
    tm_eff = min(tm, _round_up(M, 8))
    tn_eff = min(tn, _round_up(V, 128))
    M_pad = _round_up(M, tm_eff)
    V_pad = _round_up(V, tn_eff)

    x_p = x if M_pad == M else jnp.pad(x, ((0, M_pad - M), (0, 0)))
    w_p = w_t_bf16 if V_pad == V else jnp.pad(w_t_bf16, ((0, 0), (0, V_pad - V)))
    b_p = bias if V_pad == V else jnp.pad(bias, (0, V_pad - V))

    gamma2 = gamma.reshape(1, D)
    beta2 = beta.reshape(1, D)
    bias2 = b_p.reshape(1, V_pad)

    grid = (M_pad // tm_eff, V_pad // tn_eff)

    # VMEM budget: double-buffered in/out tiles + LN scratch, with headroom.
    vmem_bytes = (
        2 * (tm_eff * D * 4 + 2 * D * 4 + D * tn_eff * 2 + tn_eff * 4
             + tm_eff * tn_eff * 4)
        + tm_eff * D * 2
    )
    vmem_limit = min(max(vmem_bytes + (4 << 20), 32 << 20), 96 << 20)

    # TODO(synk): for very large d_model, add a k (reduction) grid axis over D
    # for the weight only and accumulate into a VMEM f32 scratch, so tn stays
    # large without the (D, tn) weight tile blowing VMEM on v7x (64 MiB).
    out = pl.pallas_call(
        _ln_proj_kernel,
        out_shape=jax.ShapeDtypeStruct((M_pad, V_pad), jnp.float32),
        grid_spec=pltpu.PrefetchScalarGridSpec(
            num_scalar_prefetch=0,
            grid=grid,
            in_specs=[
                pl.BlockSpec((tm_eff, D), lambda i, j: (i, 0)),
                pl.BlockSpec((1, D), lambda i, j: (0, 0)),
                pl.BlockSpec((1, D), lambda i, j: (0, 0)),
                pl.BlockSpec((D, tn_eff), lambda i, j: (0, j)),
                pl.BlockSpec((1, tn_eff), lambda i, j: (0, j)),
            ],
            out_specs=pl.BlockSpec((tm_eff, tn_eff), lambda i, j: (i, j)),
            scratch_shapes=[pltpu.VMEM((tm_eff, D), jnp.bfloat16)],
        ),
        compiler_params=pltpu.CompilerParams(
            dimension_semantics=("parallel", "arbitrary"),
            vmem_limit_bytes=vmem_limit,
        ),
    )(x_p, gamma2, beta2, w_p, bias2)

    return out[:M, :V]


class MyGPTPallas:
    """JAX/Pallas re-implementation of MyGPT's forward pass."""

    def __init__(self, vocab_size, d_model, max_len, hidden_dim, dropout_prob,
                 n_layers, num_heads, use_multiple_head, key):
        self.vocab_size = vocab_size
        self.d_model = d_model

        k_wte, k_w, k_b = jax.random.split(key, 3)
        # nn.Embedding default init: N(0, 1)
        self.wte = jax.random.normal(k_wte, (vocab_size, d_model), jnp.float32)
        # nn.LayerNorm default init: weight=1, bias=0
        self.ln_gamma = jnp.ones((d_model,), jnp.float32)
        self.ln_beta = jnp.zeros((d_model,), jnp.float32)
        # nn.Linear default init: U(-1/sqrt(fan_in), 1/sqrt(fan_in))
        bound = 1.0 / math.sqrt(d_model)
        w = jax.random.uniform(k_w, (vocab_size, d_model), jnp.float32,
                               minval=-bound, maxval=bound)
        # Weights are stored pre-transposed and in bf16 for MXU streaming.
        self.fc_w_t = jnp.transpose(w).astype(jnp.bfloat16)  # (d_model, vocab)
        self.fc_b = jax.random.uniform(k_b, (vocab_size,), jnp.float32,
                                       minval=-bound, maxval=bound)
        # TODO(synk): self.pe and self.blocks are initialized by the PyTorch
        # module but never used in MyGPT.forward, so they are omitted here.

    def forward(self, inputs, targets=None):
        B, S = inputs.shape
        # Embedding lookup (gather) — plain JAX glue.
        embeddings = jnp.take(self.wte, inputs, axis=0)  # (B, S, D)
        x = embeddings.reshape(B * S, self.d_model)
        logits_flat = ln_proj(x, self.ln_gamma, self.ln_beta,
                              self.fc_w_t, self.fc_b)
        logits = logits_flat.reshape(B, S, self.vocab_size)

        loss = None
        if targets is not None:
            # TODO(synk): for large vocab, fuse cross-entropy into the kernel
            # epilogue to avoid materializing the full (M, V) f32 logits.
            lf = logits.reshape(B * S, self.vocab_size)
            tf = targets.reshape(B * S)
            logz = jax.nn.logsumexp(lf, axis=-1)
            picked = jnp.take_along_axis(lf, tf[:, None], axis=-1)[:, 0]
            loss = jnp.mean(logz - picked)
        return logits, loss


if __name__ == "__main__":
    vocab_size = 256
    d_model = 32
    max_len = 64
    hidden_dim = 64
    dropout_prob = 0.1
    n_layers = 2
    num_heads = 4
    use_multiple_head = True

    B, S = 2, 8

    key = jax.random.PRNGKey(0)
    k_params, k_inp, k_tgt = jax.random.split(key, 3)

    model = MyGPTPallas(vocab_size, d_model, max_len, hidden_dim, dropout_prob,
                        n_layers, num_heads, use_multiple_head, k_params)

    inputs = jax.random.randint(k_inp, (B, S), 0, vocab_size, dtype=jnp.int32)
    targets = jax.random.randint(k_tgt, (B, S), 0, vocab_size, dtype=jnp.int32)

    logits, loss = model.forward(inputs, targets)
    jax.block_until_ready(logits)
    jax.block_until_ready(loss)

    # Correctness check against a plain-JAX reference using the same bf16
    # weight / activation cast (LN and accumulation in f32).
    emb = jnp.take(model.wte, inputs, axis=0)
    mean = jnp.mean(emb, axis=-1, keepdims=True)
    var = jnp.mean((emb - mean) ** 2, axis=-1, keepdims=True)
    xn = (emb - mean) / jnp.sqrt(var + 1e-5)
    y = xn * model.ln_gamma + model.ln_beta
    y_bf16 = y.astype(jnp.bfloat16).astype(jnp.float32)
    w_f32 = model.fc_w_t.astype(jnp.float32)
    ref_logits = y_bf16 @ w_f32 + model.fc_b
    assert logits.shape == (B, S, vocab_size)
    assert jnp.allclose(logits, ref_logits, atol=2e-2, rtol=2e-2), "mismatch"
    assert bool(jnp.isfinite(loss)), "non-finite loss"

    print("KERNEL_OK")
</pallas_src>

<mosaic_0001>
module attributes {stable_mosaic.version = 11 : i64} {
  func.func @_ln_proj_kernel(%arg0: i32, %arg1: i32, %arg2: memref<16x32xf32, #tpu.memory_space<vmem>>, %arg3: memref<1x32xf32, #tpu.memory_space<vmem>>, %arg4: memref<1x32xf32, #tpu.memory_space<vmem>>, %arg5: memref<32x256xbf16, #tpu.memory_space<vmem>>, %arg6: memref<1x256xf32, #tpu.memory_space<vmem>>, %arg7: memref<16x256xf32, #tpu.memory_space<vmem>>, %arg8: memref<16x32xbf16, #tpu.memory_space<vmem>>) attributes {dimension_semantics = [#tpu.dimension_semantics<parallel>, #tpu.dimension_semantics<arbitrary>], iteration_bounds = array<i64: 1, 1>, scalar_prefetch = 0 : i64, scratch_operands = 1 : i64, tpu.core_type = #tpu.core_type<tc>, window_params = [{transform_indices = @transform_0, window_bounds = array<i64: 16, 32>}, {pipeline_mode = #tpu.pipeline_mode<synchronous>, transform_indices = @transform_1, window_bounds = array<i64: 1, 32>}, {pipeline_mode = #tpu.pipeline_mode<synchronous>, transform_indices = @transform_2, window_bounds = array<i64: 1, 32>}, {transform_indices = @transform_3, window_bounds = array<i64: 32, 256>}, {transform_indices = @transform_4, window_bounds = array<i64: 1, 256>}, {transform_indices = @transform_5, window_bounds = array<i64: 16, 256>}]} {
    %c0_i32 = arith.constant 0 : i32
    %0 = arith.cmpi eq, %arg1, %c0_i32 : i32
    %1 = arith.extui %0 : i1 to i32
    %c0_i32_0 = arith.constant 0 : i32
    %2 = arith.cmpi ne, %1, %c0_i32_0 : i32
    scf.if %2 {
      %c0_8 = arith.constant 0 : index
      %c0_9 = arith.constant 0 : index
      %10 = vector.load %arg2[%c0_8, %c0_9] : memref<16x32xf32, #tpu.memory_space<vmem>>, vector<16x32xf32>
      %cst_10 = arith.constant dense<0.000000e+00> : vector<16xf32>
      %11 = vector.multi_reduction <add>, %10, %cst_10 [1] : vector<16x32xf32> to vector<16xf32>
      %12 = vector.shape_cast %11 : vector<16xf32> to vector<16x1xf32>
      %cst_11 = arith.constant 3.200000e+01 : f32
      %13 = vector.broadcast %cst_11 : f32 to vector<16x1xf32>
      %14 = arith.divf %12, %13 : vector<16x1xf32>
      %15 = vector.broadcast %14 : vector<16x1xf32> to vector<16x32xf32>
      %16 = arith.subf %10, %15 : vector<16x32xf32>
      %17 = arith.mulf %16, %16 : vector<16x32xf32>
      %cst_12 = arith.constant dense<0.000000e+00> : vector<16xf32>
      %18 = vector.multi_reduction <add>, %17, %cst_12 [1] : vector<16x32xf32> to vector<16xf32>
      %19 = vector.shape_cast %18 : vector<16xf32> to vector<16x1xf32>
      %cst_13 = arith.constant 3.200000e+01 : f32
      %20 = vector.broadcast %cst_13 : f32 to vector<16x1xf32>
      %21 = arith.divf %19, %20 : vector<16x1xf32>
      %cst_14 = arith.constant 9.99999974E-6 : f32
      %22 = vector.broadcast %cst_14 : f32 to vector<16x1xf32>
      %23 = arith.addf %21, %22 : vector<16x1xf32>
      %24 = math.rsqrt %23 : vector<16x1xf32>
      %25 = vector.broadcast %24 : vector<16x1xf32> to vector<16x32xf32>
      %26 = arith.mulf %16, %25 : vector<16x32xf32>
      %c0_15 = arith.constant 0 : index
      %c0_16 = arith.constant 0 : index
      %27 = vector.load %arg3[%c0_15, %c0_16] : memref<1x32xf32, #tpu.memory_space<vmem>>, vector<1x32xf32>
      %28 = vector.broadcast %27 : vector<1x32xf32> to vector<16x32xf32>
      %29 = arith.mulf %26, %28 : vector<16x32xf32>
      %c0_17 = arith.constant 0 : index
      %c0_18 = arith.constant 0 : index
      %30 = vector.load %arg4[%c0_17, %c0_18] : memref<1x32xf32, #tpu.memory_space<vmem>>, vector<1x32xf32>
      %31 = vector.broadcast %30 : vector<1x32xf32> to vector<16x32xf32>
      %32 = arith.addf %29, %31 : vector<16x32xf32>
      %33 = arith.truncf %32 : vector<16x32xf32> to vector<16x32xbf16>
      %c0_19 = arith.constant 0 : index
      %c0_20 = arith.constant 0 : index
      %34 = vector.load %arg8[%c0_19, %c0_20] : memref<16x32xbf16, #tpu.memory_space<vmem>>, vector<16x32xbf16>
      tpu.vector_store %arg8[%c0_19, %c0_20], %33 {strides = array<i32>} : memref<16x32xbf16, #tpu.memory_space<vmem>>, vector<16x32xbf16>,
    } else {
    }
    %c0 = arith.constant 0 : index
    %c0_1 = arith.constant 0 : index
    %3 = vector.load %arg8[%c0, %c0_1] : memref<16x32xbf16, #tpu.memory_space<vmem>>, vector<16x32xbf16>
    %c0_2 = arith.constant 0 : index
    %c0_3 = arith.constant 0 : index
    %4 = vector.load %arg5[%c0_2, %c0_3] : memref<32x256xbf16, #tpu.memory_space<vmem>>, vector<32x256xbf16>
    %cst = arith.constant dense<0.000000e+00> : vector<16x256xf32>
    %5 = tpu.matmul %3, %4, %cst {dimension_numbers = #tpu.dot_dimension_numbers<[1], [0], [0], [1], [0, 0, 1, 1], [], []>} : vector<16x32xbf16>, vector<32x256xbf16>, vector<16x256xf32> -> vector<16x256xf32>
    %c0_4 = arith.constant 0 : index
    %c0_5 = arith.constant 0 : index
    %6 = vector.load %arg6[%c0_4, %c0_5] : memref<1x256xf32, #tpu.memory_space<vmem>>, vector<1x256xf32>
    %7 = vector.broadcast %6 : vector<1x256xf32> to vector<16x256xf32>
    %8 = arith.addf %5, %7 : vector<16x256xf32>
    %c0_6 = arith.constant 0 : index
    %c0_7 = arith.constant 0 : index
    %9 = vector.load %arg7[%c0_6, %c0_7] : memref<16x256xf32, #tpu.memory_space<vmem>>, vector<16x256xf32>
    tpu.vector_store %arg7[%c0_6, %c0_7], %8 {strides = array<i32>} : memref<16x256xf32, #tpu.memory_space<vmem>>, vector<16x256xf32>,
    return
  }
  func.func @transform_0(%arg0: i32, %arg1: i32) -> (i32, i32) {
    %c0_i32 = arith.constant 0 : i32
    %c0_i32_0 = arith.constant 0 : i32
    return %arg0, %c0_i32 : i32, i32
  }
  func.func @transform_1(%arg0: i32, %arg1: i32) -> (i32, i32) {
    %c0_i32 = arith.constant 0 : i32
    %c0_i32_0 = arith.constant 0 : i32
    %c0_i32_1 = arith.constant 0 : i32
    return %c0_i32, %c0_i32_0 : i32, i32
  }
  func.func @transform_2(%arg0: i32, %arg1: i32) -> (i32, i32) {
    %c0_i32 = arith.constant 0 : i32
    %c0_i32_0 = arith.constant 0 : i32
    %c0_i32_1 = arith.constant 0 : i32
    return %c0_i32, %c0_i32_0 : i32, i32
  }
  func.func @transform_3(%arg0: i32, %arg1: i32) -> (i32, i32) {
    %c0_i32 = arith.constant 0 : i32
    %c0_i32_0 = arith.constant 0 : i32
    return %c0_i32, %arg1 : i32, i32
  }
  func.func @transform_4(%arg0: i32, %arg1: i32) -> (i32, i32) {
    %c0_i32 = arith.constant 0 : i32
    %c0_i32_0 = arith.constant 0 : i32
    return %c0_i32, %arg1 : i32, i32
  }
  func.func @transform_5(%arg0: i32, %arg1: i32) -> (i32, i32) {
    %c0_i32 = arith.constant 0 : i32
    return %arg0, %arg1 : i32, i32
  }
}

</mosaic_0001>

<llo_original>
// kernel: ln_proj.1
$region0: #{ln_proj.1}
  #allocation0 [shape = 'u32[]', space=smem, size = 0x4, offset = 0x4, fixed_abs, tag = 'smem constant byte address 0x4 - core index']
  #allocation1 [shape = 'u32[72,128]{1,0:T(1,128)}', space=vmem, size = 0x9000, scoped, tag = 'internal scratch']
  #allocation2 [shape = 'bf16[16,32]{1,0:T(8,128)(2,1)}', space=vmem, size = 0x1000, scoped, tag = 'scratch operand']
  %s0 = inlined_call_operand.hbm [shape: f32[16,32], index: 0, kind: input, shape index: {}]
  %s1 = inlined_call_operand.vmem [shape: f32[1,32], index: 1, kind: input, shape index: {}]
  %s2 = inlined_call_operand.vmem [shape: f32[1,32], index: 2, kind: input, shape index: {}]
  %s3 = inlined_call_operand.hbm [shape: bf16[32,256], index: 3, kind: input, shape index: {}]
  %s4 = inlined_call_operand.vmem [shape: f32[1,256], index: 4, kind: input, shape index: {}]
  %s5 = inlined_call_operand.hbm [shape: f32[16,256], index: 5, kind: output, shape index: {}]
  %s6 = sld [smem:[#allocation0]]
  $region42: #{ln_proj.1} parent=0
    _
  %s8 = ssub.s32 1, %s6
  %s9 = scalar_select 0, %s8, %s6
  $region1: #{ln_proj.1} parent=0
    #allocation3 [shape = 'u8[8192]{0}', space=vmem, size = 0x2000, scoped, tag = 'input window, operand 0, single buffered']
    #allocation4 [shape = 's32[1]{0}', space=sflag, size = 0x4, scoped, tag = 'scoped memory for ln_proj.1']
    #allocation5 [shape = 's32[1]{0}', space=sflag, size = 0x4, scoped, tag = 'scoped memory for ln_proj.1']
    #allocation6 [shape = 'u8[16384]{0}', space=vmem, size = 0x4000, scoped, tag = 'input window, operand 3, single buffered']
    #allocation7 [shape = 's32[1]{0}', space=sflag, size = 0x4, scoped, tag = 'scoped memory for ln_proj.1']
    #allocation8 [shape = 'u8[16384]{0}', space=vmem, size = 0x4000, scoped, tag = 'output window, operand 0, single buffered']
    %10 = vsyncpa [#allocation4], 0
    %11 = vsyncpa [#allocation7], 0
    %12 = vsyncpa [#allocation5], 0
    // Predicated region
    $region2: #{ln_proj.1} parent=1 // pred_check
      _
    $region3: #{ln_proj.1} parent=1 // pred_check_branch
      %14 = sbr.rel (0) target = $region5
    $region4: #{ln_proj.1} parent=1 // pred_region
      %16 = vsyncadd [#allocation4], 0
      %s17 = sshll.u32 %s0, 4
      %s18 = int_to_ptr.hbm [resolvable:$true] %s17
      %s19 = sshll.u32 [#allocation3], 4
      %s20 = int_to_ptr.vmem [resolvable:$true] %s19
      %25 = dma.hbm_to_vmem [thread:$0]  %s18, 256, %s20, [#allocation4], 128, 128, 8
    $region5: #{ln_proj.1} parent=1 // pred_fallthru
      _
    // Predicated region
    $region6: #{ln_proj.1} parent=1 // pred_check
      _
    $region7: #{ln_proj.1} parent=1 // pred_check_branch
      %27 = sbr.rel (0) target = $region9
    $region8: #{ln_proj.1} parent=1 // pred_region
      _
    $region9: #{ln_proj.1} parent=1 // pred_fallthru
      _
    // Predicated region
    $region10: #{ln_proj.1} parent=1 // pred_check
      _
    $region11: #{ln_proj.1} parent=1 // pred_check_branch
      %29 = sbr.rel (0) target = $region13
    $region12: #{ln_proj.1} parent=1 // pred_region
      _
    $region13: #{ln_proj.1} parent=1 // pred_fallthru
      _
    // Predicated region
    $region14: #{ln_proj.1} parent=1 // pred_check
      _
    $region15: #{ln_proj.1} parent=1 // pred_check_branch
      %31 = sbr.rel (0) target = $region17
    $region16: #{ln_proj.1} parent=1 // pred_region
      %33 = vsyncadd [#allocation7], 0
      %s34 = sshll.u32 %s3, 4
      %s35 = int_to_ptr.hbm [resolvable:$true] %s34
      %s36 = sshll.u32 [#allocation6], 4
      %s37 = int_to_ptr.vmem [resolvable:$true] %s36
      %42 = dma.hbm_to_vmem [thread:$0]  %s35, 512, %s37, [#allocation7], 128, 128, 8
    $region17: #{ln_proj.1} parent=1 // pred_fallthru
      _
    // Predicated region
    $region18: #{ln_proj.1} parent=1 // pred_check
      _
    $region19: #{ln_proj.1} parent=1 // pred_check_branch
      %44 = sbr.rel (0) target = $region21
    $region20: #{ln_proj.1} parent=1 // pred_region
      _
    $region21: #{ln_proj.1} parent=1 // pred_fallthru
      _
    // Predicated region
    $region22: #{ln_proj.1} parent=1 // pred_check
      _
    $region23: #{ln_proj.1} parent=1 // pred_check_branch
      %46 = sbr.rel (0) target = $region25
    $region24: #{ln_proj.1} parent=1 // pred_region
      %48 = dma.done [#allocation4], 256
    $region25: #{ln_proj.1} parent=1 // pred_fallthru
      _
    // Predicated region
    $region26: #{ln_proj.1} parent=1 // pred_check
      _
    $region27: #{ln_proj.1} parent=1 // pred_check_branch
      %50 = sbr.rel (0) target = $region29
    $region28: #{ln_proj.1} parent=1 // pred_region
      %52 = dma.done [#allocation7], 512
    $region29: #{ln_proj.1} parent=1 // pred_fallthru
      _
    %p54 = scmp.eq.s32.totalorder 0, 0
    // Predicated region
    $region30: #{ln_proj.1} parent=1 // pred_check
      %p55 = pneg %p54
    $region31: #{ln_proj.1} parent=1 // pred_check_branch
      %57 = sbr.rel (%p55) target = $region33
    $region32: #{ln_proj.1} parent=1 // pred_region
      %v58 = vld [vmem:[#allocation3] sm:$0xff]
      %v59 = vld [vmem:[#allocation3 + $0x8] sm:$0xff]
      %vm60 = vcmask 261120
      %v61 = vsel %vm60, %v58, 0.0
      %62 = vadd.xlane.f32.xlu0 %v61
      %v63 = vpop.xlane.xlu0 %62
      %v64 = vsel %vm60, %v59, 0.0
      %65 = vadd.xlane.f32.xlu0 %v64
      %v66 = vpop.xlane.xlu0 %65
      %v67 = vrcp.pop 32.0
      %v68 = vmul.f32 32.0, %v67
      %v69 = vsub.f32 1.0, %v68
      %v70 = vmul.f32 %v67, %v69
      %v71 = vadd.f32 %v67, %v70
      %vm72 = vweird.f32 %v67
      %v73 = vsel %vm72, %v67, %v71
      %v74 = vmul.f32 %v63, %v73
      %v75 = vmul.f32 %v66, %v73
      %v76 = vsub.f32 %v58, %v74
      %v77 = vsub.f32 %v59, %v75
      %v78 = vmul.f32 %v76, %v76
      %v79 = vmul.f32 %v77, %v77
      %v80 = vsel %vm60, %v78, 0.0
      %81 = vadd.xlane.f32.xlu0 %v80
      %v82 = vpop.xlane.xlu0 %81
      %v83 = vsel %vm60, %v79, 0.0
      %84 = vadd.xlane.f32.xlu0 %v83
      %v85 = vpop.xlane.xlu0 %84
      %v86 = vmul.f32 %v82, %v73
      %v87 = vmul.f32 %v85, %v73
      %v88 = vadd.f32 %v86, 1e-05
      %v89 = vadd.f32 %v87, 1e-05
      %v90 = vrsqrt.pop %v88
      %v91 = vmul.f32 %v90, %v88
      %v92 = vmul.f32 %v91, %v90
      %v93 = vmul.f32 0.5, %v92
      %v94 = vsub.f32 1.5, %v93
      %v95 = vmul.f32 %v90, %v94
      %vm96 = vweird.f32 %v88
      %vm97 = vweird.f32 %v90
      %vm98 = vmor %vm96, %vm97
      %v99 = vsel %vm98, %v90, %v95
      %v100 = vrsqrt.pop %v89
      %v101 = vmul.f32 %v100, %v89
      %v102 = vmul.f32 %v101, %v100
      %v103 = vmul.f32 0.5, %v102
      %v104 = vsub.f32 1.5, %v103
      %v105 = vmul.f32 %v100, %v104
      %vm106 = vweird.f32 %v89
      %vm107 = vweird.f32 %v100
      %vm108 = vmor %vm106, %vm107
      %v109 = vsel %vm108, %v100, %v105
      %v110 = vmul.f32 %v76, %v99
      %v111 = vmul.f32 %v77, %v109
      %v112 = vld [vmem:[%s1] sm:$0x1]
      %v114 = vperm.slane %v112, 0
      %v116 = vmul.f32 %v110, %v114
      %v117 = vmul.f32 %v111, %v114
      %v118 = vld [vmem:[%s2] sm:$0x1]
      %v120 = vperm.slane %v118, 0
      %v122 = vadd.f32 %v116, %v120
      %v123 = vadd.f32 %v117, %v120
      %v124 = vpack.c.bf16 %v122, %v122
      %v125 = vpack.c.bf16 %v123, %v123
      %vm126 = vcmask 257024
      %127 = vst.msk [vmem:[#allocation2] sm:$0xf] %vm126, %v124
      %128 = vst.msk [vmem:[#allocation2 + $0x4] sm:$0xf] %vm126, %v125
    $region33: #{ln_proj.1} parent=1 // pred_fallthru
      _
    %v129 = vld [vmem:[#allocation2] sm:$0xf]
    %v130 = vld [vmem:[#allocation2 + $0x4] sm:$0xf]
    %v131 = vld [vmem:[#allocation6] sm:$0xff]
    %v132 = vld [vmem:[#allocation6 + $0x8] sm:$0xff]
    %v133 = vld [vmem:[#allocation6 + $0x10] sm:$0xff]
    %v134 = vld [vmem:[#allocation6 + $0x18] sm:$0xff]
    %v135 = vld [vmem:[%s4] sm:$0x3]
    %v137 = vperm.slane %v135, 0
    %v138 = vperm.slane %v135, 1
    %v143 = vunpack.c.l.b16 %v129
    %v144 = vunpack.c.l.b16 %v130
    %v145 = vpack.c.b16 %v144, %v143
    %v150 = vunpack.c.l.b16 %v131
    %v151 = vunpack.c.h.b16 %v131
    %v152 = vunpack.c.l.b16 %v132
    %v153 = vunpack.c.h.b16 %v132
    %v154 = vunpack.c.l.b16 %v133
    %v155 = vunpack.c.h.b16 %v133
    %v156 = vunpack.c.l.b16 %v134
    %v157 = vunpack.c.h.b16 %v134
    %v158 = vpack.c.b16 %v152, %v150
    %v159 = vpack.c.b16 %v153, %v151
    %v160 = vpack.c.b16 %v156, %v154
    %v161 = vpack.c.b16 %v157, %v155
    %vm166 = vcmask 261120
    %v168 = vsel %vm166, %v145, 0
    %170 = vmatpush.bf16.msra.mxu0 0
    %171 = vmatpush.bf16.msra.mxu0 0
    %172 = vmatpush.bf16.msra.mxu0 0
    %173 = vmatpush.bf16.msra.mxu0 0
    %174 = vmatpush.bf16.msra.mxu0 0
    %175 = vmatpush.bf16.msra.mxu0 0
    %176 = vmatpush.bf16.msra.mxu0 %v160
    %177 = vmatpush.bf16.msra.mxu0 %v158
    %178 = vmatmul.bf16.gmra.mxu0 %v168
    %v179 = vpop.f32.mrf.mxu0
    %v180 = vadd.f32 %v137, %v179
    %v181 = vpop.f32.mrf.mxu0
    %v182 = vadd.f32 %v137, %v181
    %183 = vdwg.mxu0
    %184 = vmatpush.bf16.msra.mxu0 0
    %185 = vmatpush.bf16.msra.mxu0 0
    %186 = vmatpush.bf16.msra.mxu0 0
    %187 = vmatpush.bf16.msra.mxu0 0
    %188 = vmatpush.bf16.msra.mxu0 0
    %189 = vmatpush.bf16.msra.mxu0 0
    %190 = vmatpush.bf16.msra.mxu0 %v161
    %191 = vmatpush.bf16.msra.mxu0 %v159
    %192 = vmatmul.bf16.gmra.mxu0 %v168
    %v193 = vpop.f32.mrf.mxu0
    %v194 = vadd.f32 %v138, %v193
    %v195 = vpop.f32.mrf.mxu0
    %v196 = vadd.f32 %v138, %v195
    %197 = vdwg.mxu0
    %198 = vst [vmem:[#allocation8] sm:$0xff] %v180
    %199 = vst [vmem:[#allocation8 + $0x8] sm:$0xff] %v194
    %200 = vst [vmem:[#allocation8 + $0x10] sm:$0xff] %v182
    %201 = vst [vmem:[#allocation8 + $0x18] sm:$0xff] %v196
    // Predicated region
    $region34: #{ln_proj.1} parent=1 // pred_check
      _
    $region35: #{ln_proj.1} parent=1 // pred_check_branch
      %203 = sbr.rel (0) target = $region37
    $region36: #{ln_proj.1} parent=1 // pred_region
      %205 = vsyncadd [#allocation5], 0
      %s206 = sshll.u32 [#allocation8], 4
      %s207 = int_to_ptr.vmem [resolvable:$true] %s206
      %s208 = sshll.u32 %s5, 4
      %s209 = int_to_ptr.hbm [resolvable:$true] %s208
      %214 = dma.vmem_to_hbm [thread:$0]  %s207, 512, %s209, [#allocation5], 256, 256, 16
    $region37: #{ln_proj.1} parent=1 // pred_fallthru
      _
    // Predicated region
    $region38: #{ln_proj.1} parent=1 // pred_check
      _
    $region39: #{ln_proj.1} parent=1 // pred_check_branch
      %216 = sbr.rel (0) target = $region41
    $region40: #{ln_proj.1} parent=1 // pred_region
      %218 = dma.done [#allocation5], 512
    $region41: #{ln_proj.1} parent=1 // pred_fallthru
      _
    %219 = vsyncpa [#allocation4], 1
    %220 = vsyncpa [#allocation7], 1
    %221 = vsyncpa [#allocation5], 1

</llo_original>
